<compile_context>
chip_gen: v5e
topology: v5e:2x2
jax: 0.10.0
libtpu: 0.0.40
codegen_flags: <defaults>
</compile_context>

<pallas_src>
import math

import jax
import jax.numpy as jnp
from jax.experimental import pallas as pl
from jax.experimental.pallas import tpu as pltpu

# ---- model hyperparameters (small, consistent with the module) ----
B = 2          # batch
S = 8          # seq_len
D = 32         # d_model
H = 4          # num_heads
HEAD_DIM = D // H
D_FF = 64      # feed-forward hidden
EPS = 1e-12

HS = H * S        # 32: head-blocked key columns (h*S + k)
SMALL_W = 128     # padded lane width for packed small params
SLAB_W = 128      # lane-dense output slab width


def encoder_layer_kernel(
    x_ref,          # (B*S, D)
    mask_ref,       # (B, S, S)
    wqkv_ref,       # (D, 3D)
    wo_ref,         # (D, D)
    w1_ref,         # (D, D_FF)
    w2_ref,         # (D_FF, D)
    small_ref,      # (8, 128) packed: bqkv|bo|b1|b2|g1|be1|g2|be2
    headmask_ref,   # (HS, D)  1.0 where blocked row's head == feature's head
    blockones_ref,  # (HS, HS) 1.0 where both blocked columns belong to same head
    slab_ref,       # (B*S, 128) out: [:, :D]=out2, [:, D:D+HS]=attn (blocked)
):
    xf = x_ref[...]                               # (B*S, D)
    small = small_ref[...]                        # (8, 128)

    bqkv = small[0:1, 0:3 * D]                    # (1, 3D)
    bo = small[1:2, 0:D]
    b1 = small[2:3, 0:D_FF]
    b2 = small[3:4, 0:D]
    g1 = small[4:5, 0:D]
    be1 = small[5:6, 0:D]
    g2 = small[6:7, 0:D]
    be2 = small[7:8, 0:D]

    # ---- fused Q/K/V projection (one MXU matmul) ----
    qkv = jnp.dot(xf, wqkv_ref[...], preferred_element_type=jnp.float32) + bqkv  # (B*S, 3D)

    q3 = qkv[:, 0:D].reshape(B, S, D)             # (B, S, D)
    k3 = qkv[:, D:2 * D].reshape(B, S, D)
    v3 = qkv[:, 2 * D:3 * D].reshape(B, S, D)

    # ---- head-blocked K / V: row h*S+k = K[k] / V[k] restricted to head h ----
    hm = headmask_ref[...]                        # (HS, D)
    kx = jnp.concatenate([k3] * H, axis=1) * hm[None, :, :]   # (B, HS, D)
    vx = jnp.concatenate([v3] * H, axis=1) * hm[None, :, :]   # (B, HS, D)

    # ---- all-head scores in one head-batched einsum ----
    scale = 1.0 / math.sqrt(HEAD_DIM)
    scores = jnp.einsum("bqd,bkd->bqk", q3, kx,
                        preferred_element_type=jnp.float32) * scale    # (B, S, HS)

    # additive mask bias (computed once, replicated over the head blocks)
    mask_bias = jnp.where(mask_ref[...] == 0.0, -1e9, 0.0)             # (B, S, S)
    scores = scores + jnp.concatenate([mask_bias] * H, axis=-1)        # (B, S, HS)

    # ---- head-segmented softmax (per-row max shift; block-ones matmul sums) ----
    s2 = scores.reshape(B * S, HS)                                     # (B*S, HS)
    m = jnp.max(s2, axis=-1, keepdims=True)
    e = jnp.exp(s2 - m)
    # per-head denominators, broadcast back across that head's lanes
    denom = jnp.dot(e, blockones_ref[...], preferred_element_type=jnp.float32)
    inv = pl.reciprocal(denom, approx=True)
    inv = inv * (2.0 - denom * inv)               # one Newton step -> ~f32 accuracy
    attn = e * inv                                # (B*S, HS), layout [b*S+q, h*S+k]

    # ---- all-head context in one head-batched einsum, then output projection ----
    ctx = jnp.einsum("bqk,bkd->bqd", attn.reshape(B, S, HS), vx,
                     preferred_element_type=jnp.float32).reshape(B * S, D)
    attn_out = jnp.dot(ctx, wo_ref[...], preferred_element_type=jnp.float32) + bo

    # ---- LayerNorm (single-pass fused stats, unbiased=False, eps inside sqrt) ----
    def layer_norm(a, gamma, beta):
        mean = jnp.mean(a, axis=-1, keepdims=True)
        msq = jnp.mean(a * a, axis=-1, keepdims=True)
        var = jnp.maximum(msq - mean * mean, 0.0)
        return gamma * ((a - mean) * jax.lax.rsqrt(var + EPS)) + beta

    # ---- Add & Norm 1 ----
    out1 = layer_norm(xf + attn_out, g1, be1)

    # ---- Position-wise feed forward ----
    h1 = jnp.maximum(jnp.dot(out1, w1_ref[...], preferred_element_type=jnp.float32) + b1, 0.0)
    ff = jnp.dot(h1, w2_ref[...], preferred_element_type=jnp.float32) + b2

    # ---- Add & Norm 2 ----
    out2 = layer_norm(out1 + ff, g2, be2)

    # ---- single lane-dense (B*S, 128) store: [ out2 | attn | zero pad ] ----
    pad = jnp.zeros((B * S, SLAB_W - D - HS), jnp.float32)
    slab_ref[...] = jnp.concatenate([out2, attn, pad], axis=-1)


def encoder_layer(x, mask, params):
    """x: [B,S,D] f32, mask: [B,S,S] f32 (0 => masked). Returns (out2, attn_weights)."""
    (wq, bq, wk, bk, wv, bv, wo, bo, g1, be1, w1, b1, w2, b2, g2, be2) = params

    # --- pack parameters in the wrapper (one-time, outside the kernel) ---
    wqkv = jnp.concatenate([wq, wk, wv], axis=1)            # (D, 3D)
    bqkv = jnp.concatenate([bq, bk, bv], axis=1)            # (1, 3D)

    def pad_row(v):
        return jnp.pad(v, ((0, 0), (0, SMALL_W - v.shape[1])))

    small = jnp.concatenate(
        [pad_row(bqkv), pad_row(bo), pad_row(b1), pad_row(b2),
         pad_row(g1), pad_row(be1), pad_row(g2), pad_row(be2)], axis=0)  # (8, 128)

    # --- head-blocking constants (tiny, built once in the wrapper) ---
    row_head = jnp.arange(HS) // S                # head id of blocked row h*S+k
    col_head = jnp.arange(D) // HEAD_DIM          # head id of feature column
    headmask = (row_head[:, None] == col_head[None, :]).astype(jnp.float32)   # (HS, D)
    blockones = (row_head[:, None] == row_head[None, :]).astype(jnp.float32)  # (HS, HS)

    x_flat = x.reshape(B * S, D)

    vmem = lambda: pl.BlockSpec(memory_space=pltpu.MemorySpace.VMEM)

    # Single-shot call: no grid, everything resident in VMEM (~100 KB total).
    # TODO(synk): v7x — add grid=(B,) marked "parallel" (weights index_map->0)
    # to use the second TensorCore; single-shot is best on v5e/v6e.
    slab = pl.pallas_call(
        encoder_layer_kernel,
        out_shape=jax.ShapeDtypeStruct((B * S, SLAB_W), jnp.float32),
        in_specs=[vmem() for _ in range(9)],
        out_specs=vmem(),
    )(x_flat, mask, wqkv, wo, w1, w2, small, headmask, blockones)

    # --- unpack the lane-dense slab (layout plumbing only, outside the kernel) ---
    out2 = slab[:, :D].reshape(B, S, D)
    # blocked attn layout [b*S+q, h*S+k] -> (B, H, S, S)
    attn_w = slab[:, D:D + HS].reshape(B, S, H, S).transpose(0, 2, 1, 3)
    return out2, attn_w


# ---------------- pure-JAX reference (for correctness check) ----------------
def encoder_layer_ref(x, mask, params):
    (wq, bq, wk, bk, wv, bv, wo, bo, g1, be1, w1, b1, w2, b2, g2, be2) = params
    q = x @ wq + bq
    k = x @ wk + bk
    v = x @ wv + bv

    def split(t):  # [B,S,D] -> [B,H,S,hd]
        return t.reshape(B, S, H, HEAD_DIM).transpose(0, 2, 1, 3)

    qh, kh, vh = split(q), split(k), split(v)
    scores = jnp.einsum("bhqd,bhkd->bhqk", qh, kh) / math.sqrt(HEAD_DIM)
    scores = jnp.where(mask[:, None, :, :] == 0, -1e9, scores)
    attn = jax.nn.softmax(scores, axis=-1)
    ao = jnp.einsum("bhqk,bhkd->bhqd", attn, vh)
    ao = ao.transpose(0, 2, 1, 3).reshape(B, S, D)
    ao = ao @ wo + bo

    def ln(a, gamma, beta):
        mean = a.mean(-1, keepdims=True)
        var = ((a - mean) ** 2).mean(-1, keepdims=True)
        return gamma * ((a - mean) / jnp.sqrt(var + EPS)) + beta

    out1 = ln(x + ao, gamma=g1[0], beta=be1[0])
    ff = jnp.maximum(out1 @ w1 + b1, 0.0) @ w2 + b2
    out2 = ln(out1 + ff, gamma=g2[0], beta=be2[0])
    return out2, attn


def init_params(key):
    ks = jax.random.split(key, 8)

    def lin(k, fan_in, fan_out):
        bound = 1.0 / math.sqrt(fan_in)
        kw, kb = jax.random.split(k)
        w = jax.random.uniform(kw, (fan_in, fan_out), jnp.float32, -bound, bound)
        b = jax.random.uniform(kb, (1, fan_out), jnp.float32, -bound, bound)
        return w, b

    wq, bq = lin(ks[0], D, D)
    wk, bk = lin(ks[1], D, D)
    wv, bv = lin(ks[2], D, D)
    wo, bo = lin(ks[3], D, D)
    w1, b1 = lin(ks[4], D, D_FF)
    w2, b2 = lin(ks[5], D_FF, D)
    g1 = jnp.ones((1, D), jnp.float32)
    be1 = jnp.zeros((1, D), jnp.float32)
    g2 = jnp.ones((1, D), jnp.float32)
    be2 = jnp.zeros((1, D), jnp.float32)
    return (wq, bq, wk, bk, wv, bv, wo, bo, g1, be1, w1, b1, w2, b2, g2, be2)


if __name__ == "__main__":
    key = jax.random.PRNGKey(0)
    kx, kp = jax.random.split(key)
    x = jax.random.normal(kx, (B, S, D), jnp.float32)
    # mask: 1 = attend, 0 = masked; mask out the last position per batch element.
    mask = jnp.ones((B, S, S), jnp.float32).at[:, :, -1].set(0.0)
    params = init_params(kp)

    out2, attn_w = encoder_layer(x, mask, params)
    jax.block_until_ready((out2, attn_w))

    ref_out2, ref_attn = encoder_layer_ref(x, mask, params)
    assert jnp.allclose(out2, ref_out2, atol=1e-4, rtol=1e-4), "out2 mismatch"
    assert jnp.allclose(attn_w, ref_attn, atol=1e-5, rtol=1e-5), "attn_weights mismatch"

    print("KERNEL_OK")
</pallas_src>

<mosaic_0001>
module attributes {stable_mosaic.version = 11 : i64} {
  func.func @encoder_layer_kernel(%arg0: memref<16x32xf32, #tpu.memory_space<vmem>>, %arg1: memref<2x8x8xf32, #tpu.memory_space<vmem>>, %arg2: memref<32x96xf32, #tpu.memory_space<vmem>>, %arg3: memref<32x32xf32, #tpu.memory_space<vmem>>, %arg4: memref<32x64xf32, #tpu.memory_space<vmem>>, %arg5: memref<64x32xf32, #tpu.memory_space<vmem>>, %arg6: memref<8x128xf32, #tpu.memory_space<vmem>>, %arg7: memref<32x32xf32, #tpu.memory_space<vmem>>, %arg8: memref<32x32xf32, #tpu.memory_space<vmem>>, %arg9: memref<16x128xf32, #tpu.memory_space<vmem>>) attributes {dimension_semantics = [], scalar_prefetch = 0 : i64, scratch_operands = 0 : i64, tpu.core_type = #tpu.core_type<tc>} {
    %c0 = arith.constant 0 : index
    %c0_0 = arith.constant 0 : index
    %0 = vector.load %arg0[%c0, %c0_0] : memref<16x32xf32, #tpu.memory_space<vmem>>, vector<16x32xf32>
    %c0_1 = arith.constant 0 : index
    %c0_2 = arith.constant 0 : index
    %1 = vector.load %arg6[%c0_1, %c0_2] : memref<8x128xf32, #tpu.memory_space<vmem>>, vector<8x128xf32>
    %2 = vector.extract_strided_slice %1 {offsets = [0, 0], sizes = [1, 96], strides = [1, 1]} : vector<8x128xf32> to vector<1x96xf32>
    %3 = vector.extract_strided_slice %1 {offsets = [1, 0], sizes = [1, 32], strides = [1, 1]} : vector<8x128xf32> to vector<1x32xf32>
    %4 = vector.extract_strided_slice %1 {offsets = [2, 0], sizes = [1, 64], strides = [1, 1]} : vector<8x128xf32> to vector<1x64xf32>
    %5 = vector.extract_strided_slice %1 {offsets = [3, 0], sizes = [1, 32], strides = [1, 1]} : vector<8x128xf32> to vector<1x32xf32>
    %6 = vector.extract_strided_slice %1 {offsets = [4, 0], sizes = [1, 32], strides = [1, 1]} : vector<8x128xf32> to vector<1x32xf32>
    %7 = vector.extract_strided_slice %1 {offsets = [5, 0], sizes = [1, 32], strides = [1, 1]} : vector<8x128xf32> to vector<1x32xf32>
    %8 = vector.extract_strided_slice %1 {offsets = [6, 0], sizes = [1, 32], strides = [1, 1]} : vector<8x128xf32> to vector<1x32xf32>
    %9 = vector.extract_strided_slice %1 {offsets = [7, 0], sizes = [1, 32], strides = [1, 1]} : vector<8x128xf32> to vector<1x32xf32>
    %c0_3 = arith.constant 0 : index
    %c0_4 = arith.constant 0 : index
    %10 = vector.load %arg2[%c0_3, %c0_4] : memref<32x96xf32, #tpu.memory_space<vmem>>, vector<32x96xf32>
    %cst = arith.constant dense<0.000000e+00> : vector<16x96xf32>
    %11 = tpu.matmul %0, %10, %cst {dimension_numbers = #tpu.dot_dimension_numbers<[1], [0], [0], [1], [0, 0, 1, 1], [], []>} : vector<16x32xf32>, vector<32x96xf32>, vector<16x96xf32> -> vector<16x96xf32>
    %12 = vector.broadcast %2 : vector<1x96xf32> to vector<16x96xf32>
    %13 = arith.addf %11, %12 : vector<16x96xf32>
    %14 = vector.extract_strided_slice %13 {offsets = [0, 0], sizes = [16, 32], strides = [1, 1]} : vector<16x96xf32> to vector<16x32xf32>
    %15 = vector.shape_cast %14 : vector<16x32xf32> to vector<2x8x32xf32>
    %16 = vector.extract_strided_slice %13 {offsets = [0, 32], sizes = [16, 32], strides = [1, 1]} : vector<16x96xf32> to vector<16x32xf32>
    %17 = vector.shape_cast %16 : vector<16x32xf32> to vector<2x8x32xf32>
    %18 = vector.extract_strided_slice %13 {offsets = [0, 64], sizes = [16, 32], strides = [1, 1]} : vector<16x96xf32> to vector<16x32xf32>
    %19 = vector.shape_cast %18 : vector<16x32xf32> to vector<2x8x32xf32>
    %c0_5 = arith.constant 0 : index
    %c0_6 = arith.constant 0 : index
    %20 = vector.load %arg7[%c0_5, %c0_6] : memref<32x32xf32, #tpu.memory_space<vmem>>, vector<32x32xf32>
    %21 = tpu.concatenate %17, %17, %17, %17 in 1 : vector<2x8x32xf32>, vector<2x8x32xf32>, vector<2x8x32xf32>, vector<2x8x32xf32> -> vector<2x32x32xf32>
    %22 = vector.shape_cast %20 : vector<32x32xf32> to vector<1x32x32xf32>
    %23 = vector.broadcast %22 : vector<1x32x32xf32> to vector<2x32x32xf32>
    %24 = arith.mulf %21, %23 : vector<2x32x32xf32>
    %25 = tpu.concatenate %19, %19, %19, %19 in 1 : vector<2x8x32xf32>, vector<2x8x32xf32>, vector<2x8x32xf32>, vector<2x8x32xf32> -> vector<2x32x32xf32>
    %26 = vector.shape_cast %20 : vector<32x32xf32> to vector<1x32x32xf32>
    %27 = vector.broadcast %26 : vector<1x32x32xf32> to vector<2x32x32xf32>
    %28 = arith.mulf %25, %27 : vector<2x32x32xf32>
    "tpu.trace_start"() <{level = 10 : i32, message = "bqd,bkd->bqk"}> : () -> ()
    %cst_7 = arith.constant dense<0.000000e+00> : vector<2x8x32xf32>
    %29 = tpu.matmul %15, %24, %cst_7 {dimension_numbers = #tpu.dot_dimension_numbers<[2], [2], [1], [1], [0, 0, 0, 1, 1, 1], [0], [0]>} : vector<2x8x32xf32>, vector<2x32x32xf32>, vector<2x8x32xf32> -> vector<2x8x32xf32>
    "tpu.trace_stop"() : () -> ()
    %cst_8 = arith.constant 0.353553385 : f32
    %30 = vector.broadcast %cst_8 : f32 to vector<2x8x32xf32>
    %31 = arith.mulf %29, %30 : vector<2x8x32xf32>
    %c0_9 = arith.constant 0 : index
    %c0_10 = arith.constant 0 : index
    %c0_11 = arith.constant 0 : index
    %32 = vector.load %arg1[%c0_9, %c0_10, %c0_11] : memref<2x8x8xf32, #tpu.memory_space<vmem>>, vector<2x8x8xf32>
    %cst_12 = arith.constant 0.000000e+00 : f32
    %33 = vector.broadcast %cst_12 : f32 to vector<2x8x8xf32>
    %34 = arith.cmpf oeq, %32, %33 : vector<2x8x8xf32>
    %cst_13 = arith.constant -1.000000e+09 : f32
    %cst_14 = arith.constant 0.000000e+00 : f32
    %35 = vector.broadcast %cst_13 : f32 to vector<2x8x8xf32>
    %36 = vector.broadcast %cst_14 : f32 to vector<2x8x8xf32>
    %37 = arith.select %34, %35, %36 : vector<2x8x8xi1>, vector<2x8x8xf32>
    %38 = tpu.concatenate %37, %37, %37, %37 in 2 : vector<2x8x8xf32>, vector<2x8x8xf32>, vector<2x8x8xf32>, vector<2x8x8xf32> -> vector<2x8x32xf32>
    %39 = arith.addf %31, %38 : vector<2x8x32xf32>
    %40 = vector.shape_cast %39 : vector<2x8x32xf32> to vector<16x32xf32>
    %cst_15 = arith.constant dense<0xFF800000> : vector<16xf32>
    %41 = vector.multi_reduction <maximumf>, %40, %cst_15 [1] : vector<16x32xf32> to vector<16xf32>
    %42 = vector.shape_cast %41 : vector<16xf32> to vector<16x1xf32>
    %43 = vector.broadcast %42 : vector<16x1xf32> to vector<16x32xf32>
    %44 = arith.subf %40, %43 : vector<16x32xf32>
    %45 = math.exp %44 : vector<16x32xf32>
    %c0_16 = arith.constant 0 : index
    %c0_17 = arith.constant 0 : index
    %46 = vector.load %arg8[%c0_16, %c0_17] : memref<32x32xf32, #tpu.memory_space<vmem>>, vector<32x32xf32>
    %cst_18 = arith.constant dense<0.000000e+00> : vector<16x32xf32>
    %47 = tpu.matmul %45, %46, %cst_18 {dimension_numbers = #tpu.dot_dimension_numbers<[1], [0], [0], [1], [0, 0, 1, 1], [], []>} : vector<16x32xf32>, vector<32x32xf32>, vector<16x32xf32> -> vector<16x32xf32>
    %48 = tpu.reciprocal %47 {approx = true} : vector<16x32xf32> -> vector<16x32xf32>
    %49 = arith.mulf %47, %48 : vector<16x32xf32>
    %cst_19 = arith.constant 2.000000e+00 : f32
    %50 = vector.broadcast %cst_19 : f32 to vector<16x32xf32>
    %51 = arith.subf %50, %49 : vector<16x32xf32>
    %52 = arith.mulf %48, %51 : vector<16x32xf32>
    %53 = arith.mulf %45, %52 : vector<16x32xf32>
    %54 = vector.shape_cast %53 : vector<16x32xf32> to vector<2x8x32xf32>
    "tpu.trace_start"() <{level = 10 : i32, message = "bqk,bkd->bqd"}> : () -> ()
    %cst_20 = arith.constant dense<0.000000e+00> : vector<2x8x32xf32>
    %55 = tpu.matmul %54, %28, %cst_20 {dimension_numbers = #tpu.dot_dimension_numbers<[2], [1], [1], [2], [0, 0, 0, 1, 1, 2], [0], [0]>} : vector<2x8x32xf32>, vector<2x32x32xf32>, vector<2x8x32xf32> -> vector<2x8x32xf32>
    "tpu.trace_stop"() : () -> ()
    %56 = vector.shape_cast %55 : vector<2x8x32xf32> to vector<16x32xf32>
    %c0_21 = arith.constant 0 : index
    %c0_22 = arith.constant 0 : index
    %57 = vector.load %arg3[%c0_21, %c0_22] : memref<32x32xf32, #tpu.memory_space<vmem>>, vector<32x32xf32>
    %cst_23 = arith.constant dense<0.000000e+00> : vector<16x32xf32>
    %58 = tpu.matmul %56, %57, %cst_23 {dimension_numbers = #tpu.dot_dimension_numbers<[1], [0], [0], [1], [0, 0, 1, 1], [], []>} : vector<16x32xf32>, vector<32x32xf32>, vector<16x32xf32> -> vector<16x32xf32>
    %59 = vector.broadcast %3 : vector<1x32xf32> to vector<16x32xf32>
    %60 = arith.addf %58, %59 : vector<16x32xf32>
    %61 = arith.addf %0, %60 : vector<16x32xf32>
    %cst_24 = arith.constant dense<0.000000e+00> : vector<16xf32>
    %62 = vector.multi_reduction <add>, %61, %cst_24 [1] : vector<16x32xf32> to vector<16xf32>
    %63 = vector.shape_cast %62 : vector<16xf32> to vector<16x1xf32>
    %cst_25 = arith.constant 3.200000e+01 : f32
    %64 = vector.broadcast %cst_25 : f32 to vector<16x1xf32>
    %65 = arith.divf %63, %64 : vector<16x1xf32>
    %66 = arith.mulf %61, %61 : vector<16x32xf32>
    %cst_26 = arith.constant dense<0.000000e+00> : vector<16xf32>
    %67 = vector.multi_reduction <add>, %66, %cst_26 [1] : vector<16x32xf32> to vector<16xf32>
    %68 = vector.shape_cast %67 : vector<16xf32> to vector<16x1xf32>
    %cst_27 = arith.constant 3.200000e+01 : f32
    %69 = vector.broadcast %cst_27 : f32 to vector<16x1xf32>
    %70 = arith.divf %68, %69 : vector<16x1xf32>
    %71 = arith.mulf %65, %65 : vector<16x1xf32>
    %72 = arith.subf %70, %71 : vector<16x1xf32>
    %cst_28 = arith.constant 0.000000e+00 : f32
    %73 = vector.broadcast %cst_28 : f32 to vector<16x1xf32>
    %74 = arith.maximumf %72, %73 : vector<16x1xf32>
    %75 = vector.broadcast %65 : vector<16x1xf32> to vector<16x32xf32>
    %76 = arith.subf %61, %75 : vector<16x32xf32>
    %cst_29 = arith.constant 9.99999996E-13 : f32
    %77 = vector.broadcast %cst_29 : f32 to vector<16x1xf32>
    %78 = arith.addf %74, %77 : vector<16x1xf32>
    %79 = math.rsqrt %78 : vector<16x1xf32>
    %80 = vector.broadcast %79 : vector<16x1xf32> to vector<16x32xf32>
    %81 = arith.mulf %76, %80 : vector<16x32xf32>
    %82 = vector.broadcast %6 : vector<1x32xf32> to vector<16x32xf32>
    %83 = arith.mulf %82, %81 : vector<16x32xf32>
    %84 = vector.broadcast %7 : vector<1x32xf32> to vector<16x32xf32>
    %85 = arith.addf %83, %84 : vector<16x32xf32>
    %c0_30 = arith.constant 0 : index
    %c0_31 = arith.constant 0 : index
    %86 = vector.load %arg4[%c0_30, %c0_31] : memref<32x64xf32, #tpu.memory_space<vmem>>, vector<32x64xf32>
    %cst_32 = arith.constant dense<0.000000e+00> : vector<16x64xf32>
    %87 = tpu.matmul %85, %86, %cst_32 {dimension_numbers = #tpu.dot_dimension_numbers<[1], [0], [0], [1], [0, 0, 1, 1], [], []>} : vector<16x32xf32>, vector<32x64xf32>, vector<16x64xf32> -> vector<16x64xf32>
    %88 = vector.broadcast %4 : vector<1x64xf32> to vector<16x64xf32>
    %89 = arith.addf %87, %88 : vector<16x64xf32>
    %cst_33 = arith.constant 0.000000e+00 : f32
    %90 = vector.broadcast %cst_33 : f32 to vector<16x64xf32>
    %91 = arith.maximumf %89, %90 : vector<16x64xf32>
    %c0_34 = arith.constant 0 : index
    %c0_35 = arith.constant 0 : index
    %92 = vector.load %arg5[%c0_34, %c0_35] : memref<64x32xf32, #tpu.memory_space<vmem>>, vector<64x32xf32>
    %cst_36 = arith.constant dense<0.000000e+00> : vector<16x32xf32>
    %93 = tpu.matmul %91, %92, %cst_36 {dimension_numbers = #tpu.dot_dimension_numbers<[1], [0], [0], [1], [0, 0, 1, 1], [], []>} : vector<16x64xf32>, vector<64x32xf32>, vector<16x32xf32> -> vector<16x32xf32>
    %94 = vector.broadcast %5 : vector<1x32xf32> to vector<16x32xf32>
    %95 = arith.addf %93, %94 : vector<16x32xf32>
    %96 = arith.addf %85, %95 : vector<16x32xf32>
    %cst_37 = arith.constant dense<0.000000e+00> : vector<16xf32>
    %97 = vector.multi_reduction <add>, %96, %cst_37 [1] : vector<16x32xf32> to vector<16xf32>
    %98 = vector.shape_cast %97 : vector<16xf32> to vector<16x1xf32>
    %cst_38 = arith.constant 3.200000e+01 : f32
    %99 = vector.broadcast %cst_38 : f32 to vector<16x1xf32>
    %100 = arith.divf %98, %99 : vector<16x1xf32>
    %101 = arith.mulf %96, %96 : vector<16x32xf32>
    %cst_39 = arith.constant dense<0.000000e+00> : vector<16xf32>
    %102 = vector.multi_reduction <add>, %101, %cst_39 [1] : vector<16x32xf32> to vector<16xf32>
    %103 = vector.shape_cast %102 : vector<16xf32> to vector<16x1xf32>
    %cst_40 = arith.constant 3.200000e+01 : f32
    %104 = vector.broadcast %cst_40 : f32 to vector<16x1xf32>
    %105 = arith.divf %103, %104 : vector<16x1xf32>
    %106 = arith.mulf %100, %100 : vector<16x1xf32>
    %107 = arith.subf %105, %106 : vector<16x1xf32>
    %cst_41 = arith.constant 0.000000e+00 : f32
    %108 = vector.broadcast %cst_41 : f32 to vector<16x1xf32>
    %109 = arith.maximumf %107, %108 : vector<16x1xf32>
    %110 = vector.broadcast %100 : vector<16x1xf32> to vector<16x32xf32>
    %111 = arith.subf %96, %110 : vector<16x32xf32>
    %cst_42 = arith.constant 9.99999996E-13 : f32
    %112 = vector.broadcast %cst_42 : f32 to vector<16x1xf32>
    %113 = arith.addf %109, %112 : vector<16x1xf32>
    %114 = math.rsqrt %113 : vector<16x1xf32>
    %115 = vector.broadcast %114 : vector<16x1xf32> to vector<16x32xf32>
    %116 = arith.mulf %111, %115 : vector<16x32xf32>
    %117 = vector.broadcast %8 : vector<1x32xf32> to vector<16x32xf32>
    %118 = arith.mulf %117, %116 : vector<16x32xf32>
    %119 = vector.broadcast %9 : vector<1x32xf32> to vector<16x32xf32>
    %120 = arith.addf %118, %119 : vector<16x32xf32>
    %cst_43 = arith.constant 0.000000e+00 : f32
    %121 = vector.broadcast %cst_43 : f32 to vector<16x64xf32>
    %122 = tpu.concatenate %120, %53, %121 in 1 : vector<16x32xf32>, vector<16x32xf32>, vector<16x64xf32> -> vector<16x128xf32>
    %c0_44 = arith.constant 0 : index
    %c0_45 = arith.constant 0 : index
    %123 = vector.load %arg9[%c0_44, %c0_45] : memref<16x128xf32, #tpu.memory_space<vmem>>, vector<16x128xf32>
    tpu.vector_store %arg9[%c0_44, %c0_45], %122 {strides = array<i32>} : memref<16x128xf32, #tpu.memory_space<vmem>>, vector<16x128xf32>,
    return
  }
}

</mosaic_0001>

<llo_original>
// kernel: tpu_custom_call.1
$region0: #{tpu_custom_call.1}
  #allocation0 [shape = 'u32[]', space=smem, size = 0x4, offset = 0x4, fixed_abs, tag = 'smem constant byte address 0x4 - core index']
  #allocation1 [shape = 'u32[72,128]{1,0:T(1,128)}', space=vmem, size = 0x9000, scoped, tag = 'internal scratch']
  %s0 = inlined_call_operand.hbm [shape: f32[16,32], index: 0, kind: input, shape index: {}]
  %s1 = inlined_call_operand.hbm [shape: f32[2,8,8], index: 1, kind: input, shape index: {}]
  %s2 = inlined_call_operand.vmem [shape: f32[32,96], index: 2, kind: input, shape index: {}]
  %s3 = inlined_call_operand.vmem [shape: f32[32,32], index: 3, kind: input, shape index: {}]
  %s4 = inlined_call_operand.vmem [shape: f32[32,64], index: 4, kind: input, shape index: {}]
  %s5 = inlined_call_operand.vmem [shape: f32[64,32], index: 5, kind: input, shape index: {}]
  %s6 = inlined_call_operand.hbm [shape: f32[8,128], index: 6, kind: input, shape index: {}]
  %s7 = inlined_call_operand.hbm [shape: f32[32,32], index: 7, kind: input, shape index: {}]
  %s8 = inlined_call_operand.hbm [shape: f32[32,32], index: 8, kind: input, shape index: {}]
  %s9 = inlined_call_operand.hbm [shape: f32[16,128], index: 9, kind: output, shape index: {}]
  %s10 = sld [smem:[#allocation0]]
  $region66: #{tpu_custom_call.1} parent=0
    _
  %s12 = ssub.s32 1, %s10
  %s13 = scalar_select 0, %s12, %s10
  $region1: #{tpu_custom_call.1} parent=0
    #allocation2 [shape = 'u8[8192]{0}', space=vmem, size = 0x2000, scoped, tag = 'input window, operand 0, single buffered']
    #allocation3 [shape = 's32[1]{0}', space=sflag, size = 0x4, scoped, tag = 'scoped memory for tpu_custom_call.1']
    #allocation4 [shape = 's32[1]{0}', space=sflag, size = 0x4, scoped, tag = 'scoped memory for tpu_custom_call.1']
    #allocation5 [shape = 'u8[8192]{0}', space=vmem, size = 0x2000, scoped, tag = 'input window, operand 1, single buffered']
    #allocation6 [shape = 's32[1]{0}', space=sflag, size = 0x4, scoped, tag = 'scoped memory for tpu_custom_call.1']
    #allocation7 [shape = 'u8[4096]{0}', space=vmem, size = 0x1000, scoped, tag = 'input window, operand 6, single buffered']
    #allocation8 [shape = 'u8[16384]{0}', space=vmem, size = 0x4000, scoped, tag = 'input window, operand 7, single buffered']
    #allocation9 [shape = 's32[1]{0}', space=sflag, size = 0x4, scoped, tag = 'scoped memory for tpu_custom_call.1']
    #allocation10 [shape = 'u8[16384]{0}', space=vmem, size = 0x4000, scoped, tag = 'input window, operand 8, single buffered']
    #allocation11 [shape = 'u8[8192]{0}', space=vmem, size = 0x2000, scoped, tag = 'output window, operand 0, single buffered']
    %14 = vsyncpa [#allocation3], 0
    %15 = vsyncpa [#allocation6], 0
    %16 = vsyncpa [#allocation9], 0
    %17 = vsyncpa [#allocation4], 0
    // Predicated region
    $region2: #{tpu_custom_call.1} parent=1 // pred_check
      _
    $region3: #{tpu_custom_call.1} parent=1 // pred_check_branch
      %19 = sbr.rel (0) target = $region5
    $region4: #{tpu_custom_call.1} parent=1 // pred_region
      %21 = vsyncadd [#allocation3], 0
      %s22 = sshll.u32 %s0, 4
      %s23 = int_to_ptr.hbm [resolvable:$true] %s22
      %s24 = sshll.u32 [#allocation2], 4
      %s25 = int_to_ptr.vmem [resolvable:$true] %s24
      %30 = dma.hbm_to_vmem [thread:$0]  %s23, 256, %s25, [#allocation3], 128, 128, 8
    $region5: #{tpu_custom_call.1} parent=1 // pred_fallthru
      _
    // Predicated region
    $region6: #{tpu_custom_call.1} parent=1 // pred_check
      _
    $region7: #{tpu_custom_call.1} parent=1 // pred_check_branch
      %32 = sbr.rel (0) target = $region9
    $region8: #{tpu_custom_call.1} parent=1 // pred_region
      %34 = vsyncadd [#allocation6], 0
      %s35 = sshll.u32 %s1, 4
      %s36 = int_to_ptr.hbm [resolvable:$true] %s35
      %s37 = sshll.u32 [#allocation5], 4
      %s38 = int_to_ptr.vmem [resolvable:$true] %s37
      %43 = dma.hbm_to_vmem [thread:$0]  %s36, 256, %s38, [#allocation6], 128, 128, 8
    $region9: #{tpu_custom_call.1} parent=1 // pred_fallthru
      _
    // Predicated region
    $region10: #{tpu_custom_call.1} parent=1 // pred_check
      _
    $region11: #{tpu_custom_call.1} parent=1 // pred_check_branch
      %45 = sbr.rel (0) target = $region13
    $region12: #{tpu_custom_call.1} parent=1 // pred_region
      _
    $region13: #{tpu_custom_call.1} parent=1 // pred_fallthru
      _
    // Predicated region
    $region14: #{tpu_custom_call.1} parent=1 // pred_check
      _
    $region15: #{tpu_custom_call.1} parent=1 // pred_check_branch
      %47 = sbr.rel (0) target = $region17
    $region16: #{tpu_custom_call.1} parent=1 // pred_region
      _
    $region17: #{tpu_custom_call.1} parent=1 // pred_fallthru
      _
    // Predicated region
    $region18: #{tpu_custom_call.1} parent=1 // pred_check
      _
    $region19: #{tpu_custom_call.1} parent=1 // pred_check_branch
      %49 = sbr.rel (0) target = $region21
    $region20: #{tpu_custom_call.1} parent=1 // pred_region
      _
    $region21: #{tpu_custom_call.1} parent=1 // pred_fallthru
      _
    // Predicated region
    $region22: #{tpu_custom_call.1} parent=1 // pred_check
      _
    $region23: #{tpu_custom_call.1} parent=1 // pred_check_branch
      %51 = sbr.rel (0) target = $region25
    $region24: #{tpu_custom_call.1} parent=1 // pred_region
      _
    $region25: #{tpu_custom_call.1} parent=1 // pred_fallthru
      _
    // Predicated region
    $region26: #{tpu_custom_call.1} parent=1 // pred_check
      _
    $region27: #{tpu_custom_call.1} parent=1 // pred_check_branch
      %53 = sbr.rel (0) target = $region29
    $region28: #{tpu_custom_call.1} parent=1 // pred_region
      %55 = vsyncadd [#allocation6], 0
      %s57 = sshll.u32 %s6, 4
      %s58 = int_to_ptr.hbm [resolvable:$true] %s57
      %s59 = sshll.u32 [#allocation7], 4
      %s60 = int_to_ptr.vmem [resolvable:$true] %s59
      %62 = dma.hbm_to_vmem [thread:$0]  %s58, 128, %s60, [#allocation6]
    $region29: #{tpu_custom_call.1} parent=1 // pred_fallthru
      _
    // Predicated region
    $region30: #{tpu_custom_call.1} parent=1 // pred_check
      _
    $region31: #{tpu_custom_call.1} parent=1 // pred_check_branch
      %64 = sbr.rel (0) target = $region33
    $region32: #{tpu_custom_call.1} parent=1 // pred_region
      %66 = vsyncadd [#allocation9], 0
      %s67 = sshll.u32 %s7, 4
      %s68 = int_to_ptr.hbm [resolvable:$true] %s67
      %s69 = sshll.u32 [#allocation8], 4
      %s70 = int_to_ptr.vmem [resolvable:$true] %s69
      %75 = dma.hbm_to_vmem [thread:$0]  %s68, 512, %s70, [#allocation9], 128, 128, 8
    $region33: #{tpu_custom_call.1} parent=1 // pred_fallthru
      _
    // Predicated region
    $region34: #{tpu_custom_call.1} parent=1 // pred_check
      _
    $region35: #{tpu_custom_call.1} parent=1 // pred_check_branch
      %77 = sbr.rel (0) target = $region37
    $region36: #{tpu_custom_call.1} parent=1 // pred_region
      %79 = vsyncadd [#allocation9], 0
      %s80 = sshll.u32 %s8, 4
      %s81 = int_to_ptr.hbm [resolvable:$true] %s80
      %s82 = sshll.u32 [#allocation10], 4
      %s83 = int_to_ptr.vmem [resolvable:$true] %s82
      %88 = dma.hbm_to_vmem [thread:$0]  %s81, 512, %s83, [#allocation9], 128, 128, 8
    $region37: #{tpu_custom_call.1} parent=1 // pred_fallthru
      _
    // Predicated region
    $region38: #{tpu_custom_call.1} parent=1 // pred_check
      _
    $region39: #{tpu_custom_call.1} parent=1 // pred_check_branch
      %90 = sbr.rel (0) target = $region41
    $region40: #{tpu_custom_call.1} parent=1 // pred_region
      %92 = dma.done [#allocation3], 256
    $region41: #{tpu_custom_call.1} parent=1 // pred_fallthru
      _
    // Predicated region
    $region42: #{tpu_custom_call.1} parent=1 // pred_check
      _
    $region43: #{tpu_custom_call.1} parent=1 // pred_check_branch
      %94 = sbr.rel (0) target = $region45
    $region44: #{tpu_custom_call.1} parent=1 // pred_region
      %96 = dma.done [#allocation6], 256
    $region45: #{tpu_custom_call.1} parent=1 // pred_fallthru
      _
    // Predicated region
    $region46: #{tpu_custom_call.1} parent=1 // pred_check
      _
    $region47: #{tpu_custom_call.1} parent=1 // pred_check_branch
      %98 = sbr.rel (0) target = $region49
    $region48: #{tpu_custom_call.1} parent=1 // pred_region
      %100 = dma.done [#allocation6], 128
    $region49: #{tpu_custom_call.1} parent=1 // pred_fallthru
      _
    // Predicated region
    $region50: #{tpu_custom_call.1} parent=1 // pred_check
      _
    $region51: #{tpu_custom_call.1} parent=1 // pred_check_branch
      %102 = sbr.rel (0) target = $region53
    $region52: #{tpu_custom_call.1} parent=1 // pred_region
      %104 = dma.done [#allocation9], 512
    $region53: #{tpu_custom_call.1} parent=1 // pred_fallthru
      _
    // Predicated region
    $region54: #{tpu_custom_call.1} parent=1 // pred_check
      _
    $region55: #{tpu_custom_call.1} parent=1 // pred_check_branch
      %106 = sbr.rel (0) target = $region57
    $region56: #{tpu_custom_call.1} parent=1 // pred_region
      %108 = dma.done [#allocation9], 512
    $region57: #{tpu_custom_call.1} parent=1 // pred_fallthru
      _
    %v109 = vld [vmem:[#allocation2] sm:$0xff]
    %v110 = vld [vmem:[#allocation2 + $0x8] sm:$0xff]
    %v111 = vld [vmem:[#allocation7] sm:$0xff]
    %v112 = vld [vmem:[%s2] sm:$0xff]
    %v113 = vld [vmem:[%s2 + $0x8] sm:$0xff]
    %v114 = vld [vmem:[%s2 + $0x10] sm:$0xff]
    %v115 = vld [vmem:[%s2 + $0x18] sm:$0xff]
    %v116 = vperm.slane %v111, 0
    %vm117 = vcmask 261120
    %v119 = vsel %vm117, %v109, 0
    %v122 = vsel %vm117, %v110, 0
    %124 = vmatpush.msra.mxu0 0.0
    %125 = vmatpush.msra.mxu0 0.0
    %126 = vmatpush.msra.mxu0 0.0
    %127 = vmatpush.msra.mxu0 0.0
    %128 = vmatpush.msra.mxu0 0.0
    %129 = vmatpush.msra.mxu0 0.0
    %130 = vmatpush.msra.mxu0 0.0
    %131 = vmatpush.msra.mxu0 0.0
    %132 = vmatpush.msra.mxu0 0.0
    %133 = vmatpush.msra.mxu0 0.0
    %134 = vmatpush.msra.mxu0 0.0
    %135 = vmatpush.msra.mxu0 0.0
    %136 = vmatpush.msra.mxu0 %v115
    %137 = vmatpush.msra.mxu0 %v114
    %138 = vmatpush.msra.mxu0 %v113
    %139 = vmatpush.msra.mxu0 %v112
    %140 = vmatmul.f32.gmra.mxu0 %v119
    %v141 = vpop.f32.mrf.mxu0
    %v142 = vadd.f32 %v116, %v141
    %143 = vmatmul.f32.gmra.mxu0 %v122
    %v144 = vpop.f32.mrf.mxu0
    %v145 = vadd.f32 %v116, %v144
    %146 = vdwg.mxu0
    %v147 = vld [vmem:[#allocation8] sm:$0xff]
    %v148 = vld [vmem:[#allocation8 + $0x8] sm:$0xff]
    %v149 = vld [vmem:[#allocation8 + $0x10] sm:$0xff]
    %v150 = vld [vmem:[#allocation8 + $0x18] sm:$0xff]
    %155 = vrot.lane.b32.xlu0 %v147, 32
    %v156 = vpop.permute.xlu0 %155
    %157 = vrot.lane.b32.xlu0 %v148, 32
    %v158 = vpop.permute.xlu0 %157
    %159 = vrot.lane.b32.xlu0 %v149, 32
    %v160 = vpop.permute.xlu0 %159
    %161 = vrot.lane.b32.xlu0 %v150, 32
    %v162 = vpop.permute.xlu0 %161
    %v167 = vmul.f32 %v142, %v156
    %v168 = vmul.f32 %v142, %v158
    %v169 = vmul.f32 %v142, %v160
    %v170 = vmul.f32 %v142, %v162
    %v171 = vmul.f32 %v145, %v156
    %v172 = vmul.f32 %v145, %v158
    %v173 = vmul.f32 %v145, %v160
    %v174 = vmul.f32 %v145, %v162
    %175 = vrot.lane.b32.xlu0 %v147, 64
    %v176 = vpop.permute.xlu0 %175
    %177 = vrot.lane.b32.xlu0 %v148, 64
    %v178 = vpop.permute.xlu0 %177
    %179 = vrot.lane.b32.xlu0 %v149, 64
    %v180 = vpop.permute.xlu0 %179
    %181 = vrot.lane.b32.xlu0 %v150, 64
    %v182 = vpop.permute.xlu0 %181
    %v187 = vmul.f32 %v142, %v176
    %v188 = vmul.f32 %v142, %v178
    %v189 = vmul.f32 %v142, %v180
    %v190 = vmul.f32 %v142, %v182
    %v191 = vmul.f32 %v145, %v176
    %v192 = vmul.f32 %v145, %v178
    %v193 = vmul.f32 %v145, %v180
    %v194 = vmul.f32 %v145, %v182
    %199 = vrot.lane.b32.xlu0 %v167, 96
    %v200 = vpop.permute.xlu0 %199
    %201 = vrot.lane.b32.xlu0 %v168, 96
    %v202 = vpop.permute.xlu0 %201
    %203 = vrot.lane.b32.xlu0 %v169, 96
    %v204 = vpop.permute.xlu0 %203
    %205 = vrot.lane.b32.xlu0 %v170, 96
    %v206 = vpop.permute.xlu0 %205
    %v208 = vsel %vm117, %v142, 0
    %v210 = vsel %vm117, %v200, 0
    %v212 = vsel %vm117, %v202, 0
    %v214 = vsel %vm117, %v204, 0
    %v216 = vsel %vm117, %v206, 0
    %218 = vmatpush.xpose.msra.mxu0 0.0
    %219 = vmatpush.xpose.msra.mxu0 0.0
    %220 = vmatpush.xpose.msra.mxu0 0.0
    %221 = vmatpush.xpose.msra.mxu0 0.0
    %222 = vmatpush.xpose.msra.mxu0 0.0
    %223 = vmatpush.xpose.msra.mxu0 0.0
    %224 = vmatpush.xpose.msra.mxu0 0.0
    %225 = vmatpush.xpose.msra.mxu0 0.0
    %226 = vmatpush.xpose.msra.mxu0 0.0
    %227 = vmatpush.xpose.msra.mxu0 0.0
    %228 = vmatpush.xpose.msra.mxu0 0.0
    %229 = vmatpush.xpose.msra.mxu0 0.0
    %230 = vmatpush.xpose.msra.mxu0 %v216
    %231 = vmatpush.xpose.msra.mxu0 %v214
    %232 = vmatpush.xpose.msra.mxu0 %v212
    %233 = vmatpush.xpose.msra.mxu0 %v210
    %234 = vmatmul.f32.gmra.mxu0 %v208
    %v235 = vpop.f32.mrf.mxu0
    %v236 = vadd.f32 0.0, %v235
    %237 = vdwg.mxu0
    %242 = vrot.lane.b32.xlu0 %v171, 96
    %v243 = vpop.permute.xlu0 %242
    %244 = vrot.lane.b32.xlu0 %v172, 96
    %v245 = vpop.permute.xlu0 %244
    %246 = vrot.lane.b32.xlu0 %v173, 96
    %v247 = vpop.permute.xlu0 %246
    %248 = vrot.lane.b32.xlu0 %v174, 96
    %v249 = vpop.permute.xlu0 %248
    %v251 = vsel %vm117, %v145, 0
    %v253 = vsel %vm117, %v243, 0
    %v255 = vsel %vm117, %v245, 0
    %v257 = vsel %vm117, %v247, 0
    %v259 = vsel %vm117, %v249, 0
    %261 = vmatpush.xpose.msra.mxu0 0.0
    %262 = vmatpush.xpose.msra.mxu0 0.0
    %263 = vmatpush.xpose.msra.mxu0 0.0
    %264 = vmatpush.xpose.msra.mxu0 0.0
    %265 = vmatpush.xpose.msra.mxu0 0.0
    %266 = vmatpush.xpose.msra.mxu0 0.0
    %267 = vmatpush.xpose.msra.mxu0 0.0
    %268 = vmatpush.xpose.msra.mxu0 0.0
    %269 = vmatpush.xpose.msra.mxu0 0.0
    %270 = vmatpush.xpose.msra.mxu0 0.0
    %271 = vmatpush.xpose.msra.mxu0 0.0
    %272 = vmatpush.xpose.msra.mxu0 0.0
    %273 = vmatpush.xpose.msra.mxu0 %v259
    %274 = vmatpush.xpose.msra.mxu0 %v257
    %275 = vmatpush.xpose.msra.mxu0 %v255
    %276 = vmatpush.xpose.msra.mxu0 %v253
    %277 = vmatmul.f32.gmra.mxu0 %v251
    %v278 = vpop.f32.mrf.mxu0
    %v279 = vadd.f32 0.0, %v278
    %280 = vdwg.mxu0
    %v281 = vmul.f32 %v236, 0.35355338
    %v282 = vmul.f32 %v279, 0.35355338
    %v283 = vld [vmem:[#allocation5] sm:$0xff]
    %v284 = vld [vmem:[#allocation5 + $0x8] sm:$0xff]
    %vm285 = vcmp.eq.f32.partialorder %v283, 0.0
    %vm286 = vcmp.eq.f32.partialorder %v284, 0.0
    %v287 = vsel %vm285, -1e+09, 0.0
    %v288 = vsel %vm286, -1e+09, 0.0
    %291 = vrot.lane.b32.xlu0 %v287, 8
    %v292 = vpop.permute.xlu0 %291
    %293 = vrot.lane.b32.xlu0 %v288, 8
    %v294 = vpop.permute.xlu0 %293
    %297 = vrot.lane.b32.xlu0 %v287, 16
    %v298 = vpop.permute.xlu0 %297
    %299 = vrot.lane.b32.xlu0 %v288, 16
    %v300 = vpop.permute.xlu0 %299
    %303 = vrot.lane.b32.xlu0 %v287, 24
    %v304 = vpop.permute.xlu0 %303
    %305 = vrot.lane.b32.xlu0 %v288, 24
    %v306 = vpop.permute.xlu0 %305
    %vm309 = vcmask 64512
    %v310 = vsel %vm309, %v287, %v292
    %v311 = vsel %vm309, %v288, %v294
    %vm312 = vcmask 130048
    %v313 = vsel %vm312, %v310, %v298
    %v314 = vsel %vm312, %v311, %v300
    %vm315 = vcmask 195584
    %v316 = vsel %vm315, %v313, %v304
    %v317 = vsel %vm315, %v314, %v306
    %v318 = vadd.f32 %v281, %v316
    %v319 = vadd.f32 %v282, %v317
    %v320 = vsel %vm117, %v318, -inf
    %321 = vmax.xlane.f32.xlu0 %v320
    %v322 = vpop.xlane.xlu0 %321
    %v323 = vsel %vm117, %v319, -inf
    %324 = vmax.xlane.f32.xlu0 %v323
    %v325 = vpop.xlane.xlu0 %324
    %v326 = vsub.f32 %v318, %v322
    %v327 = vsub.f32 %v319, %v325
    %v328 = vmul.f32 %v326, 1.442695
    %v329 = vpow.pop %v328
    %v330 = vmul.f32 %v327, 1.442695
    %v331 = vpow.pop %v330
    %v332 = vld [vmem:[#allocation10] sm:$0xff]
    %v333 = vld [vmem:[#allocation10 + $0x8] sm:$0xff]
    %v334 = vld [vmem:[#allocation10 + $0x10] sm:$0xff]
    %v335 = vld [vmem:[#allocation10 + $0x18] sm:$0xff]
    %v337 = vsel %vm117, %v329, 0
    %v340 = vsel %vm117, %v331, 0
    %342 = vmatpush.msra.mxu0 0.0
    %343 = vmatpush.msra.mxu0 0.0
    %344 = vmatpush.msra.mxu0 0.0
    %345 = vmatpush.msra.mxu0 0.0
    %346 = vmatpush.msra.mxu0 0.0
    %347 = vmatpush.msra.mxu0 0.0
    %348 = vmatpush.msra.mxu0 0.0
    %349 = vmatpush.msra.mxu0 0.0
    %350 = vmatpush.msra.mxu0 0.0
    %351 = vmatpush.msra.mxu0 0.0
    %352 = vmatpush.msra.mxu0 0.0
    %353 = vmatpush.msra.mxu0 0.0
    %354 = vmatpush.msra.mxu0 %v335
    %355 = vmatpush.msra.mxu0 %v334
    %356 = vmatpush.msra.mxu0 %v333
    %357 = vmatpush.msra.mxu0 %v332
    %358 = vmatmul.f32.gmra.mxu0 %v337
    %v359 = vpop.f32.mrf.mxu0
    %v360 = vadd.f32 0.0, %v359
    %361 = vmatmul.f32.gmra.mxu0 %v340
    %v362 = vpop.f32.mrf.mxu0
    %v363 = vadd.f32 0.0, %v362
    %364 = vdwg.mxu0
    %v365 = vrcp.pop %v360
    %v366 = vrcp.pop %v363
    %v367 = vmul.f32 %v360, %v365
    %v368 = vmul.f32 %v363, %v366
    %v369 = vsub.f32 2.0, %v367
    %v370 = vsub.f32 2.0, %v368
    %v371 = vmul.f32 %v365, %v369
    %v372 = vmul.f32 %v366, %v370
    %v373 = vmul.f32 %v329, %v371
    %v374 = vmul.f32 %v331, %v372
    %379 = vrot.lane.b32.xlu0 %v187, 64
    %v380 = vpop.permute.xlu0 %379
    %381 = vrot.lane.b32.xlu0 %v188, 64
    %v382 = vpop.permute.xlu0 %381
    %383 = vrot.lane.b32.xlu0 %v189, 64
    %v384 = vpop.permute.xlu0 %383
    %385 = vrot.lane.b32.xlu0 %v190, 64
    %v386 = vpop.permute.xlu0 %385
    %v392 = vsel %vm117, %v373, 0
    %394 = vmatpush.msra.mxu0 0.0
    %395 = vmatpush.msra.mxu0 0.0
    %396 = vmatpush.msra.mxu0 0.0
    %397 = vmatpush.msra.mxu0 0.0
    %398 = vmatpush.msra.mxu0 0.0
    %399 = vmatpush.msra.mxu0 0.0
    %400 = vmatpush.msra.mxu0 0.0
    %401 = vmatpush.msra.mxu0 0.0
    %402 = vmatpush.msra.mxu0 0.0
    %403 = vmatpush.msra.mxu0 0.0
    %404 = vmatpush.msra.mxu0 0.0
    %405 = vmatpush.msra.mxu0 0.0
    %406 = vmatpush.msra.mxu0 %v386
    %407 = vmatpush.msra.mxu0 %v384
    %408 = vmatpush.msra.mxu0 %v382
    %409 = vmatpush.msra.mxu0 %v380
    %410 = vmatmul.f32.gmra.mxu0 %v392
    %v411 = vpop.f32.mrf.mxu0
    %v412 = vadd.f32 0.0, %v411
    %413 = vdwg.mxu0
    %418 = vrot.lane.b32.xlu0 %v191, 64
    %v419 = vpop.permute.xlu0 %418
    %420 = vrot.lane.b32.xlu0 %v192, 64
    %v421 = vpop.permute.xlu0 %420
    %422 = vrot.lane.b32.xlu0 %v193, 64
    %v423 = vpop.permute.xlu0 %422
    %424 = vrot.lane.b32.xlu0 %v194, 64
    %v425 = vpop.permute.xlu0 %424
    %v431 = vsel %vm117, %v374, 0
    %433 = vmatpush.msra.mxu0 0.0
    %434 = vmatpush.msra.mxu0 0.0
    %435 = vmatpush.msra.mxu0 0.0
    %436 = vmatpush.msra.mxu0 0.0
    %437 = vmatpush.msra.mxu0 0.0
    %438 = vmatpush.msra.mxu0 0.0
    %439 = vmatpush.msra.mxu0 0.0
    %440 = vmatpush.msra.mxu0 0.0
    %441 = vmatpush.msra.mxu0 0.0
    %442 = vmatpush.msra.mxu0 0.0
    %443 = vmatpush.msra.mxu0 0.0
    %444 = vmatpush.msra.mxu0 0.0
    %445 = vmatpush.msra.mxu0 %v425
    %446 = vmatpush.msra.mxu0 %v423
    %447 = vmatpush.msra.mxu0 %v421
    %448 = vmatpush.msra.mxu0 %v419
    %449 = vmatmul.f32.gmra.mxu0 %v431
    %v450 = vpop.f32.mrf.mxu0
    %v451 = vadd.f32 0.0, %v450
    %452 = vdwg.mxu0
    %v453 = vld [vmem:[%s3] sm:$0xff]
    %v454 = vld [vmem:[%s3 + $0x8] sm:$0xff]
    %v455 = vld [vmem:[%s3 + $0x10] sm:$0xff]
    %v456 = vld [vmem:[%s3 + $0x18] sm:$0xff]
    %v457 = vperm.slane %v111, 1
    %v459 = vsel %vm117, %v412, 0
    %v462 = vsel %vm117, %v451, 0
    %464 = vmatpush.msra.mxu0 0.0
    %465 = vmatpush.msra.mxu0 0.0
    %466 = vmatpush.msra.mxu0 0.0
    %467 = vmatpush.msra.mxu0 0.0
    %468 = vmatpush.msra.mxu0 0.0
    %469 = vmatpush.msra.mxu0 0.0
    %470 = vmatpush.msra.mxu0 0.0
    %471 = vmatpush.msra.mxu0 0.0
    %472 = vmatpush.msra.mxu0 0.0
    %473 = vmatpush.msra.mxu0 0.0
    %474 = vmatpush.msra.mxu0 0.0
    %475 = vmatpush.msra.mxu0 0.0
    %476 = vmatpush.msra.mxu0 %v456
    %477 = vmatpush.msra.mxu0 %v455
    %478 = vmatpush.msra.mxu0 %v454
    %479 = vmatpush.msra.mxu0 %v453
    %480 = vmatmul.f32.gmra.mxu0 %v459
    %v481 = vpop.f32.mrf.mxu0
    %v482 = vadd.f32 %v457, %v481
    %483 = vmatmul.f32.gmra.mxu0 %v462
    %v484 = vpop.f32.mrf.mxu0
    %v485 = vadd.f32 %v457, %v484
    %486 = vdwg.mxu0
    %v487 = vadd.f32 %v109, %v482
    %v488 = vadd.f32 %v110, %v485
    %v489 = vsel %vm117, %v487, 0.0
    %490 = vadd.xlane.f32.xlu0 %v489
    %v491 = vpop.xlane.xlu0 %490
    %v492 = vsel %vm117, %v488, 0.0
    %493 = vadd.xlane.f32.xlu0 %v492
    %v494 = vpop.xlane.xlu0 %493
    %v495 = vrcp.pop 32.0
    %v496 = vmul.f32 32.0, %v495
    %v497 = vsub.f32 1.0, %v496
    %v498 = vmul.f32 %v495, %v497
    %v499 = vadd.f32 %v495, %v498
    %vm500 = vweird.f32 %v495
    %v501 = vsel %vm500, %v495, %v499
    %v502 = vmul.f32 %v491, %v501
    %v503 = vmul.f32 %v494, %v501
    %v504 = vmul.f32 %v487, %v487
    %v505 = vmul.f32 %v488, %v488
    %v506 = vsel %vm117, %v504, 0.0
    %507 = vadd.xlane.f32.xlu0 %v506
    %v508 = vpop.xlane.xlu0 %507
    %v509 = vsel %vm117, %v505, 0.0
    %510 = vadd.xlane.f32.xlu0 %v509
    %v511 = vpop.xlane.xlu0 %510
    %v512 = vmul.f32 %v508, %v501
    %v513 = vmul.f32 %v511, %v501
    %v514 = vmul.f32 %v502, %v502
    %v515 = vmul.f32 %v503, %v503
    %v516 = vsub.f32 %v512, %v514
    %v517 = vsub.f32 %v513, %v515
    %v518 = vmax.f32 %v516, 0.0
    %v519 = vmax.f32 %v517, 0.0
    %v520 = vsub.f32 %v487, %v502
    %v521 = vsub.f32 %v488, %v503
    %v522 = vadd.f32 %v518, 1e-12
    %v523 = vadd.f32 %v519, 1e-12
    %v524 = vrsqrt.pop %v522
    %v525 = vmul.f32 %v524, %v522
    %v526 = vmul.f32 %v525, %v524
    %v527 = vmul.f32 0.5, %v526
    %v528 = vsub.f32 1.5, %v527
    %v529 = vmul.f32 %v524, %v528
    %vm530 = vweird.f32 %v522
    %vm531 = vweird.f32 %v524
    %vm532 = vmor %vm530, %vm531
    %v533 = vsel %vm532, %v524, %v529
    %v534 = vrsqrt.pop %v523
    %v535 = vmul.f32 %v534, %v523
    %v536 = vmul.f32 %v535, %v534
    %v537 = vmul.f32 0.5, %v536
    %v538 = vsub.f32 1.5, %v537
    %v539 = vmul.f32 %v534, %v538
    %vm540 = vweird.f32 %v523
    %vm541 = vweird.f32 %v534
    %vm542 = vmor %vm540, %vm541
    %v543 = vsel %vm542, %v534, %v539
    %v544 = vmul.f32 %v520, %v533
    %v545 = vmul.f32 %v521, %v543
    %v546 = vperm.slane %v111, 4
    %v547 = vmul.f32 %v546, %v544
    %v548 = vmul.f32 %v546, %v545
    %v549 = vperm.slane %v111, 5
    %v550 = vadd.f32 %v547, %v549
    %v551 = vadd.f32 %v548, %v549
    %v552 = vld [vmem:[%s4] sm:$0xff]
    %v553 = vld [vmem:[%s4 + $0x8] sm:$0xff]
    %v554 = vld [vmem:[%s4 + $0x10] sm:$0xff]
    %v555 = vld [vmem:[%s4 + $0x18] sm:$0xff]
    %v556 = vperm.slane %v111, 2
    %v558 = vsel %vm117, %v550, 0
    %v561 = vsel %vm117, %v551, 0
    %563 = vmatpush.msra.mxu0 0.0
    %564 = vmatpush.msra.mxu0 0.0
    %565 = vmatpush.msra.mxu0 0.0
    %566 = vmatpush.msra.mxu0 0.0
    %567 = vmatpush.msra.mxu0 0.0
    %568 = vmatpush.msra.mxu0 0.0
    %569 = vmatpush.msra.mxu0 0.0
    %570 = vmatpush.msra.mxu0 0.0
    %571 = vmatpush.msra.mxu0 0.0
    %572 = vmatpush.msra.mxu0 0.0
    %573 = vmatpush.msra.mxu0 0.0
    %574 = vmatpush.msra.mxu0 0.0
    %575 = vmatpush.msra.mxu0 %v555
    %576 = vmatpush.msra.mxu0 %v554
    %577 = vmatpush.msra.mxu0 %v553
    %578 = vmatpush.msra.mxu0 %v552
    %579 = vmatmul.f32.gmra.mxu0 %v558
    %v580 = vpop.f32.mrf.mxu0
    %v581 = vadd.f32 %v556, %v580
    %582 = vmatmul.f32.gmra.mxu0 %v561
    %v583 = vpop.f32.mrf.mxu0
    %v584 = vadd.f32 %v556, %v583
    %585 = vdwg.mxu0
    %v586 = vmax.f32 %v581, 0.0
    %v587 = vmax.f32 %v584, 0.0
    %v588 = vld [vmem:[%s5] sm:$0xff]
    %v589 = vld [vmem:[%s5 + $0x8] sm:$0xff]
    %v590 = vld [vmem:[%s5 + $0x10] sm:$0xff]
    %v591 = vld [vmem:[%s5 + $0x18] sm:$0xff]
    %v592 = vld [vmem:[%s5 + $0x20] sm:$0xff]
    %v593 = vld [vmem:[%s5 + $0x28] sm:$0xff]
    %v594 = vld [vmem:[%s5 + $0x30] sm:$0xff]
    %v595 = vld [vmem:[%s5 + $0x38] sm:$0xff]
    %v596 = vperm.slane %v111, 3
    %vm597 = vcmask 523264
    %v599 = vsel %vm597, %v586, 0
    %v602 = vsel %vm597, %v587, 0
    %604 = vmatpush.msra.mxu0 0.0
    %605 = vmatpush.msra.mxu0 0.0
    %606 = vmatpush.msra.mxu0 0.0
    %607 = vmatpush.msra.mxu0 0.0
    %608 = vmatpush.msra.mxu0 0.0
    %609 = vmatpush.msra.mxu0 0.0
    %610 = vmatpush.msra.mxu0 0.0
    %611 = vmatpush.msra.mxu0 0.0
    %612 = vmatpush.msra.mxu0 %v595
    %613 = vmatpush.msra.mxu0 %v594
    %614 = vmatpush.msra.mxu0 %v593
    %615 = vmatpush.msra.mxu0 %v592
    %616 = vmatpush.msra.mxu0 %v591
    %617 = vmatpush.msra.mxu0 %v590
    %618 = vmatpush.msra.mxu0 %v589
    %619 = vmatpush.msra.mxu0 %v588
    %620 = vmatmul.f32.gmra.mxu0 %v599
    %v621 = vpop.f32.mrf.mxu0
    %v622 = vadd.f32 %v596, %v621
    %623 = vmatmul.f32.gmra.mxu0 %v602
    %v624 = vpop.f32.mrf.mxu0
    %v625 = vadd.f32 %v596, %v624
    %626 = vdwg.mxu0
    %v627 = vadd.f32 %v550, %v622
    %v628 = vadd.f32 %v551, %v625
    %v629 = vsel %vm117, %v627, 0.0
    %630 = vadd.xlane.f32.xlu0 %v629
    %v631 = vpop.xlane.xlu0 %630
    %v632 = vsel %vm117, %v628, 0.0
    %633 = vadd.xlane.f32.xlu0 %v632
    %v634 = vpop.xlane.xlu0 %633
    %v635 = vmul.f32 %v631, %v501
    %v636 = vmul.f32 %v634, %v501
    %v637 = vmul.f32 %v627, %v627
    %v638 = vmul.f32 %v628, %v628
    %v639 = vsel %vm117, %v637, 0.0
    %640 = vadd.xlane.f32.xlu0 %v639
    %v641 = vpop.xlane.xlu0 %640
    %v642 = vsel %vm117, %v638, 0.0
    %643 = vadd.xlane.f32.xlu0 %v642
    %v644 = vpop.xlane.xlu0 %643
    %v645 = vmul.f32 %v641, %v501
    %v646 = vmul.f32 %v644, %v501
    %v647 = vmul.f32 %v635, %v635
    %v648 = vmul.f32 %v636, %v636
    %v649 = vsub.f32 %v645, %v647
    %v650 = vsub.f32 %v646, %v648
    %v651 = vmax.f32 %v649, 0.0
    %v652 = vmax.f32 %v650, 0.0
    %v653 = vsub.f32 %v627, %v635
    %v654 = vsub.f32 %v628, %v636
    %v655 = vadd.f32 %v651, 1e-12
    %v656 = vadd.f32 %v652, 1e-12
    %v657 = vrsqrt.pop %v655
    %v658 = vmul.f32 %v657, %v655
    %v659 = vmul.f32 %v658, %v657
    %v660 = vmul.f32 0.5, %v659
    %v661 = vsub.f32 1.5, %v660
    %v662 = vmul.f32 %v657, %v661
    %vm663 = vweird.f32 %v655
    %vm664 = vweird.f32 %v657
    %vm665 = vmor %vm663, %vm664
    %v666 = vsel %vm665, %v657, %v662
    %v667 = vrsqrt.pop %v656
    %v668 = vmul.f32 %v667, %v656
    %v669 = vmul.f32 %v668, %v667
    %v670 = vmul.f32 0.5, %v669
    %v671 = vsub.f32 1.5, %v670
    %v672 = vmul.f32 %v667, %v671
    %vm673 = vweird.f32 %v656
    %vm674 = vweird.f32 %v667
    %vm675 = vmor %vm673, %vm674
    %v676 = vsel %vm675, %v667, %v672
    %v677 = vmul.f32 %v653, %v666
    %v678 = vmul.f32 %v654, %v676
    %v679 = vperm.slane %v111, 6
    %v680 = vmul.f32 %v679, %v677
    %v681 = vmul.f32 %v679, %v678
    %v682 = vperm.slane %v111, 7
    %v683 = vadd.f32 %v680, %v682
    %v684 = vadd.f32 %v681, %v682
    %685 = vrot.lane.b32.xlu0 %v373, 32
    %v686 = vpop.permute.xlu0 %685
    %687 = vrot.lane.b32.xlu0 %v374, 32
    %v688 = vpop.permute.xlu0 %687
    %v691 = vsel %vm117, %v683, %v686
    %v692 = vsel %vm117, %v684, %v688
    %v693 = vsel %vm597, %v691, 0.0
    %v694 = vsel %vm597, %v692, 0.0
    %695 = vst [vmem:[#allocation11] sm:$0xff] %v693
    %696 = vst [vmem:[#allocation11 + $0x8] sm:$0xff] %v694
    // Predicated region
    $region58: #{tpu_custom_call.1} parent=1 // pred_check
      _
    $region59: #{tpu_custom_call.1} parent=1 // pred_check_branch
      %698 = sbr.rel (0) target = $region61
    $region60: #{tpu_custom_call.1} parent=1 // pred_region
      %700 = vsyncadd [#allocation4], 0
      %s701 = sshll.u32 [#allocation11], 4
      %s702 = int_to_ptr.vmem [resolvable:$true] %s701
      %s703 = sshll.u32 %s9, 4
      %s704 = int_to_ptr.hbm [resolvable:$true] %s703
      %709 = dma.vmem_to_hbm [thread:$0]  %s702, 256, %s704, [#allocation4], 128, 128, 8
    $region61: #{tpu_custom_call.1} parent=1 // pred_fallthru
      _
    // Predicated region
    $region62: #{tpu_custom_call.1} parent=1 // pred_check
      _
    $region63: #{tpu_custom_call.1} parent=1 // pred_check_branch
      %711 = sbr.rel (0) target = $region65
    $region64: #{tpu_custom_call.1} parent=1 // pred_region
      %713 = dma.done [#allocation4], 256
    $region65: #{tpu_custom_call.1} parent=1 // pred_fallthru
      _
    %714 = vsyncpa [#allocation3], 1
    %715 = vsyncpa [#allocation6], 1
    %716 = vsyncpa [#allocation9], 1
    %717 = vsyncpa [#allocation4], 1

</llo_original>
